<compile_context>
chip_gen: v6e
topology: v6e:2x2x1
jax: 0.10.0
libtpu: 0.0.40
codegen_flags: <defaults>
</compile_context>

<pallas_src>
import functools
import math

import jax
import jax.numpy as jnp
from jax.experimental import pallas as pl
from jax.experimental.pallas import tpu as pltpu

_LANE = 128
_LOG_CLAMP = math.log(1e-7)


def _ce_kernel(x_ref, t_ref, w_ref, out_ref, acc_ref, *, inv_total):
    h = pl.program_id(1)

    @pl.when(h == 0)
    def _():
        acc_ref[...] = jnp.zeros_like(acc_ref)

    x = x_ref[...].astype(jnp.float32)      # (1, C, R, 128)
    t = t_ref[...].astype(jnp.float32)      # (1, C, R, 128)
    w = w_ref[...].astype(jnp.float32)      # (1, C, 1, 128)

    # Fused log-softmax over the channel axis (axis=1; a leading vreg axis, so
    # max/sum are cross-vreg VALU adds, not XLU sublane reductions).
    m = jnp.max(x, axis=1, keepdims=True)               # (1, 1, R, 128)
    e = jnp.exp(x - m)
    lse = jnp.log(jnp.sum(e, axis=1, keepdims=True))    # (1, 1, R, 128)
    logp = x - m - lse
    # clamp(p, min=1e-7) == clamp(log p, min=log(1e-7))  (log is monotone)
    logp = jnp.maximum(logp, jnp.float32(_LOG_CLAMP))

    logit = w * (t * logp)                               # (1, C, R, 128)

    # Accumulate raw per-tile partial sums; scalar reduce deferred to epilogue.
    acc_ref[...] += jnp.sum(logit, axis=(0, 1))          # (R, 128)

    @pl.when(h == pl.num_programs(1) - 1)
    def _():
        val = -jnp.float32(inv_total) * jnp.sum(acc_ref[...])
        out_ref[...] = jnp.full(out_ref.shape, val, dtype=out_ref.dtype)


def cross_entropy_pallas(inputs, targets, weights=None, *,
                         target_block_bytes=2 * 1024 * 1024):
    """inputs/targets: (N, C, H, W). weights: list of length 1 or C."""
    if weights is None:
        weights = [1.0]
    N, C, H, W = inputs.shape
    HW = H * W
    total = N * C * H * W

    # ---- layout: (N, C, HW) -> (N, C, rows, 128) (channel off the sublane axis)
    rows = -(-HW // _LANE)

    # ---- tile the HW axis (tile_rows 128-lane rows per grid step)
    per_row_bytes = C * _LANE * 4
    tile_rows = max(1, target_block_bytes // per_row_bytes)
    if tile_rows >= rows:
        tile_rows = rows
    else:
        tile_rows = max(8, (tile_rows // 8) * 8)     # keep (8,128)-aligned tiles

    rows_p = -(-rows // tile_rows) * tile_rows
    pad = rows_p * _LANE - HW

    x = inputs.reshape(N, C, HW)
    t = targets.reshape(N, C, HW)
    if pad:
        # zero-padded targets contribute exactly zero to the sum
        x = jnp.pad(x, ((0, 0), (0, 0), (0, pad)))
        t = jnp.pad(t, ((0, 0), (0, 0), (0, pad)))
    x = x.reshape(N, C, rows_p, _LANE)
    t = t.reshape(N, C, rows_p, _LANE)

    # Tiny per-channel weight block (no full-size broadcast stream in HBM).
    w = jnp.asarray(weights, dtype=jnp.float32).reshape(-1)
    if w.shape[0] == 1:
        w = jnp.broadcast_to(w, (C,))
    w4 = jnp.broadcast_to(w.reshape(1, C, 1, 1), (1, C, 1, _LANE))

    num_hw_tiles = rows_p // tile_rows

    out = pl.pallas_call(
        functools.partial(_ce_kernel, inv_total=1.0 / float(total)),
        out_shape=jax.ShapeDtypeStruct((N, 8, _LANE), jnp.float32),
        grid_spec=pltpu.PrefetchScalarGridSpec(
            num_scalar_prefetch=0,
            grid=(N, num_hw_tiles),
            in_specs=[
                pl.BlockSpec((1, C, tile_rows, _LANE), lambda n, h: (n, 0, h, 0)),
                pl.BlockSpec((1, C, tile_rows, _LANE), lambda n, h: (n, 0, h, 0)),
                pl.BlockSpec((1, C, 1, _LANE), lambda n, h: (0, 0, 0, 0)),
            ],
            out_specs=pl.BlockSpec((1, 8, _LANE), lambda n, h: (n, 0, 0)),
            scratch_shapes=[pltpu.VMEM((tile_rows, _LANE), jnp.float32)],
        ),
        compiler_params=pltpu.CompilerParams(
            dimension_semantics=("parallel", "arbitrary"),
            vmem_limit_bytes=32 * 1024 * 1024,
        ),
    )(x, t, w4)

    # Per-batch partial sums (already scaled by -1/total); combine outside.
    return jnp.sum(out[:, 0, 0])


def cross_entropy_ref(inputs, targets, weights=None):
    """Pure-JAX reference mirroring the PyTorch forward."""
    if weights is None:
        weights = [1.0]
    out = jax.nn.softmax(inputs, axis=1)
    out = jnp.maximum(out, 1e-7)
    logit = targets * jnp.log(out)
    w = jnp.asarray(weights, dtype=inputs.dtype)[None, :, None, None]
    logit = w * logit
    return -jnp.mean(logit)


if __name__ == "__main__":
    key = jax.random.PRNGKey(0)
    k1, k2 = jax.random.split(key)

    N, C, H, W = 2, 4, 16, 16
    inputs = jax.random.normal(k1, (N, C, H, W), dtype=jnp.float32)
    # "targets" plays the role of soft labels; any nonnegative values work.
    targets = jax.nn.softmax(
        jax.random.normal(k2, (N, C, H, W), dtype=jnp.float32), axis=1)
    weights = [1.0, 2.0, 0.5, 1.5]   # per-channel class weights (deterministic)

    loss = cross_entropy_pallas(inputs, targets, weights)
    loss = jax.block_until_ready(loss)

    ref = cross_entropy_ref(inputs, targets, weights)
    assert jnp.allclose(loss, ref, rtol=1e-5, atol=1e-6), (loss, ref)

    print("KERNEL_OK")
</pallas_src>

<mosaic_0001>
module attributes {stable_mosaic.version = 11 : i64} {
  func.func @_ce_kernel(%arg0: i32, %arg1: i32, %arg2: memref<1x4x2x128xf32, #tpu.memory_space<vmem>>, %arg3: memref<1x4x2x128xf32, #tpu.memory_space<vmem>>, %arg4: memref<1x4x1x128xf32, #tpu.memory_space<vmem>>, %arg5: memref<1x8x128xf32, #tpu.memory_space<vmem>>, %arg6: memref<2x128xf32, #tpu.memory_space<vmem>>) attributes {dimension_semantics = [#tpu.dimension_semantics<parallel>, #tpu.dimension_semantics<arbitrary>], iteration_bounds = array<i64: 2, 1>, scalar_prefetch = 0 : i64, scratch_operands = 1 : i64, tpu.core_type = #tpu.core_type<tc>, window_params = [{transform_indices = @transform_0, window_bounds = array<i64: 1, 4, 2, 128>}, {transform_indices = @transform_1, window_bounds = array<i64: 1, 4, 2, 128>}, {pipeline_mode = #tpu.pipeline_mode<synchronous>, transform_indices = @transform_2, window_bounds = array<i64: 1, 4, 1, 128>}, {transform_indices = @transform_3, window_bounds = array<i64: 1, 8, 128>}]} {
    %c0_i32 = arith.constant 0 : i32
    %0 = arith.cmpi eq, %arg1, %c0_i32 : i32
    %1 = arith.extui %0 : i1 to i32
    %c0_i32_0 = arith.constant 0 : i32
    %2 = arith.cmpi ne, %1, %c0_i32_0 : i32
    scf.if %2 {
      %cst_21 = arith.constant 0.000000e+00 : f32
      %30 = vector.broadcast %cst_21 : f32 to vector<2x128xf32>
      %c0_22 = arith.constant 0 : index
      %c0_23 = arith.constant 0 : index
      %31 = vector.load %arg6[%c0_22, %c0_23] : memref<2x128xf32, #tpu.memory_space<vmem>>, vector<2x128xf32>
      tpu.vector_store %arg6[%c0_22, %c0_23], %30 {strides = array<i32>} : memref<2x128xf32, #tpu.memory_space<vmem>>, vector<2x128xf32>,
    } else {
    }
    %c0 = arith.constant 0 : index
    %c0_1 = arith.constant 0 : index
    %c0_2 = arith.constant 0 : index
    %c0_3 = arith.constant 0 : index
    %3 = vector.load %arg2[%c0, %c0_1, %c0_2, %c0_3] : memref<1x4x2x128xf32, #tpu.memory_space<vmem>>, vector<1x4x2x128xf32>
    %c0_4 = arith.constant 0 : index
    %c0_5 = arith.constant 0 : index
    %c0_6 = arith.constant 0 : index
    %c0_7 = arith.constant 0 : index
    %4 = vector.load %arg3[%c0_4, %c0_5, %c0_6, %c0_7] : memref<1x4x2x128xf32, #tpu.memory_space<vmem>>, vector<1x4x2x128xf32>
    %c0_8 = arith.constant 0 : index
    %c0_9 = arith.constant 0 : index
    %c0_10 = arith.constant 0 : index
    %c0_11 = arith.constant 0 : index
    %5 = vector.load %arg4[%c0_8, %c0_9, %c0_10, %c0_11] : memref<1x4x1x128xf32, #tpu.memory_space<vmem>>, vector<1x4x1x128xf32>
    %cst = arith.constant dense<0xFF800000> : vector<1x2x128xf32>
    %6 = vector.multi_reduction <maximumf>, %3, %cst [1] : vector<1x4x2x128xf32> to vector<1x2x128xf32>
    %7 = vector.shape_cast %6 : vector<1x2x128xf32> to vector<1x1x2x128xf32>
    %8 = vector.broadcast %7 : vector<1x1x2x128xf32> to vector<1x4x2x128xf32>
    %9 = arith.subf %3, %8 : vector<1x4x2x128xf32>
    %10 = math.exp %9 : vector<1x4x2x128xf32>
    %cst_12 = arith.constant dense<0.000000e+00> : vector<1x2x128xf32>
    %11 = vector.multi_reduction <add>, %10, %cst_12 [1] : vector<1x4x2x128xf32> to vector<1x2x128xf32>
    %12 = vector.shape_cast %11 : vector<1x2x128xf32> to vector<1x1x2x128xf32>
    %13 = math.log %12 : vector<1x1x2x128xf32>
    %14 = vector.broadcast %7 : vector<1x1x2x128xf32> to vector<1x4x2x128xf32>
    %15 = arith.subf %3, %14 : vector<1x4x2x128xf32>
    %16 = vector.broadcast %13 : vector<1x1x2x128xf32> to vector<1x4x2x128xf32>
    %17 = arith.subf %15, %16 : vector<1x4x2x128xf32>
    %cst_13 = arith.constant -16.1180954 : f32
    %18 = vector.broadcast %cst_13 : f32 to vector<1x4x2x128xf32>
    %19 = arith.maximumf %17, %18 : vector<1x4x2x128xf32>
    %20 = arith.mulf %4, %19 : vector<1x4x2x128xf32>
    %21 = vector.broadcast %5 : vector<1x4x1x128xf32> to vector<1x4x2x128xf32>
    %22 = arith.mulf %21, %20 : vector<1x4x2x128xf32>
    %c0_14 = arith.constant 0 : index
    %c0_15 = arith.constant 0 : index
    %23 = vector.load %arg6[%c0_14, %c0_15] : memref<2x128xf32, #tpu.memory_space<vmem>>, vector<2x128xf32>
    %cst_16 = arith.constant dense<0.000000e+00> : vector<2x128xf32>
    %24 = vector.multi_reduction <add>, %22, %cst_16 [0, 1] : vector<1x4x2x128xf32> to vector<2x128xf32>
    %25 = arith.addf %23, %24 : vector<2x128xf32>
    %c0_17 = arith.constant 0 : index
    %c0_18 = arith.constant 0 : index
    %26 = vector.load %arg6[%c0_17, %c0_18] : memref<2x128xf32, #tpu.memory_space<vmem>>, vector<2x128xf32>
    tpu.vector_store %arg6[%c0_17, %c0_18], %25 {strides = array<i32>} : memref<2x128xf32, #tpu.memory_space<vmem>>, vector<2x128xf32>,
    %c0_i32_19 = arith.constant 0 : i32
    %27 = arith.cmpi eq, %arg1, %c0_i32_19 : i32
    %28 = arith.extui %27 : i1 to i32
    %c0_i32_20 = arith.constant 0 : i32
    %29 = arith.cmpi ne, %28, %c0_i32_20 : i32
    scf.if %29 {
      %cst_21 = arith.constant 0.000000e+00 : f32
      %cst_22 = arith.constant 4.8828125E-4 : f32
      %30 = arith.subf %cst_21, %cst_22 : f32
      %c0_23 = arith.constant 0 : index
      %c0_24 = arith.constant 0 : index
      %31 = vector.load %arg6[%c0_23, %c0_24] : memref<2x128xf32, #tpu.memory_space<vmem>>, vector<2x128xf32>
      %32 = vector.shape_cast %31 : vector<2x128xf32> to vector<1x2x128xf32>
      %cst_25 = arith.constant dense<0.000000e+00> : vector<1xf32>
      %33 = vector.multi_reduction <add>, %32, %cst_25 [1, 2] : vector<1x2x128xf32> to vector<1xf32>
      %34 = vector.shape_cast %33 : vector<1xf32> to vector<1x1x1xf32>
      %35 = vector.extract %34[0, 0, 0] : f32 from vector<1x1x1xf32>
      %36 = arith.mulf %30, %35 : f32
      %37 = vector.broadcast %36 : f32 to vector<1x8x128xf32>
      %c0_26 = arith.constant 0 : index
      %c0_27 = arith.constant 0 : index
      %c0_28 = arith.constant 0 : index
      %38 = vector.load %arg5[%c0_26, %c0_27, %c0_28] : memref<1x8x128xf32, #tpu.memory_space<vmem>>, vector<1x8x128xf32>
      tpu.vector_store %arg5[%c0_26, %c0_27, %c0_28], %37 {strides = array<i32>} : memref<1x8x128xf32, #tpu.memory_space<vmem>>, vector<1x8x128xf32>,
    } else {
    }
    return
  }
  func.func @transform_0(%arg0: i32, %arg1: i32) -> (i32, i32, i32, i32) {
    %c0_i32 = arith.constant 0 : i32
    %c0_i32_0 = arith.constant 0 : i32
    %c0_i32_1 = arith.constant 0 : i32
    return %arg0, %c0_i32, %arg1, %c0_i32_0 : i32, i32, i32, i32
  }
  func.func @transform_1(%arg0: i32, %arg1: i32) -> (i32, i32, i32, i32) {
    %c0_i32 = arith.constant 0 : i32
    %c0_i32_0 = arith.constant 0 : i32
    %c0_i32_1 = arith.constant 0 : i32
    return %arg0, %c0_i32, %arg1, %c0_i32_0 : i32, i32, i32, i32
  }
  func.func @transform_2(%arg0: i32, %arg1: i32) -> (i32, i32, i32, i32) {
    %c0_i32 = arith.constant 0 : i32
    %c0_i32_0 = arith.constant 0 : i32
    %c0_i32_1 = arith.constant 0 : i32
    %c0_i32_2 = arith.constant 0 : i32
    %c0_i32_3 = arith.constant 0 : i32
    return %c0_i32, %c0_i32_0, %c0_i32_1, %c0_i32_2 : i32, i32, i32, i32
  }
  func.func @transform_3(%arg0: i32, %arg1: i32) -> (i32, i32, i32) {
    %c0_i32 = arith.constant 0 : i32
    %c0_i32_0 = arith.constant 0 : i32
    %c0_i32_1 = arith.constant 0 : i32
    return %arg0, %c0_i32, %c0_i32_0 : i32, i32, i32
  }
}

</mosaic_0001>

<llo_original>
// kernel: tpu_custom_call.1
$region0: #{tpu_custom_call.1}
  #allocation0 [shape = 'u32[]', space=smem, size = 0x4, offset = 0x4, fixed_abs, tag = 'smem constant byte address 0x4 - core index']
  #allocation1 [shape = 'u32[144,128]{1,0:T(1,128)}', space=vmem, size = 0x12000, scoped, tag = 'internal scratch']
  #allocation2 [shape = 'f32[2,128]{1,0:T(2,128)}', space=vmem, size = 0x400, scoped, tag = 'scratch operand']
  %s0 = inlined_call_operand.hbm [shape: f32[2,4,2,128], index: 0, kind: input, shape index: {}]
  %s1 = inlined_call_operand.hbm [shape: f32[2,4,2,128], index: 1, kind: input, shape index: {}]
  %s2 = inlined_call_operand.hbm [shape: f32[1,4,1,128], index: 2, kind: input, shape index: {}]
  %s3 = inlined_call_operand.hbm [shape: f32[2,8,128], index: 3, kind: output, shape index: {}]
  %s4 = sld [smem:[#allocation0]]
  $region65: #{tpu_custom_call.1} parent=0
    _
  %s6 = ssub.s32 1, %s4
  %s7 = scalar_select 0, %s6, %s4
  $region1: #{tpu_custom_call.1} parent=0
    #allocation3 [shape = 'u8[8192]{0}', space=vmem, size = 0x2000, scoped, tag = 'input window, operand 0']
    #allocation4 [shape = 's32[2]{0}', space=sflag, size = 0x8, scoped, tag = 'scoped memory for tpu_custom_call.1']
    #allocation5 [shape = 's32[2]{0}', space=sflag, size = 0x8, scoped, tag = 'scoped memory for tpu_custom_call.1']
    #allocation6 [shape = 'u8[8192]{0}', space=vmem, size = 0x2000, scoped, tag = 'input window, operand 1']
    #allocation7 [shape = 's32[2]{0}', space=sflag, size = 0x8, scoped, tag = 'scoped memory for tpu_custom_call.1']
    #allocation8 [shape = 'u8[2048]{0}', space=vmem, size = 0x800, scoped, tag = 'input window, operand 2, single buffered']
    #allocation9 [shape = 'u8[8192]{0}', space=vmem, size = 0x2000, scoped, tag = 'output window, operand 0']
    %8 = vsyncpa [#allocation4], 0
    %s9 = scalar_lea.sflag [#allocation4], 1
    %10 = vsyncpa %s9, 0
    %11 = vsyncpa [#allocation7], 0
    %s12 = scalar_lea.sflag [#allocation7], 1
    %13 = vsyncpa %s12, 0
    %14 = vsyncpa [#allocation5], 0
    %s15 = scalar_lea.sflag [#allocation5], 1
    %16 = vsyncpa %s15, 0
    loop: start=0, step=1, limit=4
    $region2: #{tpu_custom_call.1} parent=1 // loop_pre_header
      _
    $region3: #{tpu_custom_call.1} parent=1 // loop_header
      %s18 = sphi 0, %s22
      %p19 = scmp.ge.s32.totalorder %s18, 4
      %s25 = sphi 0, %s37
      %s26 = sphi 0, %s33
      %s27 = sphi 0, %s25
      %s28 = sphi 0, %s26
      %s29 = sphi 0, %s27
      %s30 = sphi 0, %s28
      %s42 = sphi 0, %s44
      %s45 = sphi 0, %s42
      %s46 = sphi 0, %s45
      %s62 = sphi 0, %s46
      %s70 = sphi 0, %s72
      %s73 = sphi 0, %s70
      %s74 = sphi 0, %s73
      %s90 = sphi 0, %s74
      %s94 = sphi 0, %s94
      %s96 = sphi 0, %s94
      %s97 = sphi 0, %s96
      %s111 = sphi 0, %s97
      %s117 = sphi 0, %s119
      %s120 = sphi 0, %s117
      %s121 = sphi 0, %s120
      %s137 = sphi 0, %s121
    $region4: #{tpu_custom_call.1} parent=1 // loop_header_branch
      %21 = sbr.rel (%p19) target = $region8
    $region5: #{tpu_custom_call.1} parent=1 // loop_body
      %s23 = ssub.s32 %s18, 1
      %s24 = ssub.s32 %s18, 2
      %s31 = sadd.s32 1, %s26
      %p32 = scmp.ge.s32.totalorder %s31, 1
      %s33 = scalar_select %p32, 0, %s31
      %s34 = sadd.s32 1, %s25
      %s35 = scalar_select %p32, %s34, %s25
      %p36 = scmp.ge.s32.totalorder %s35, 2
      %s37 = scalar_select %p36, 0, %s35
      %s38 = ssub.s32 %s25, %s37
      %s39 = ssub.s32 %s26, %s33
      %s40 = sor.u32 %s38, %s39
      %p41 = scmp.eq.s32.totalorder %s40, 0
      %s43 = sadd.s32 %s42, 1
      %s44 = scalar_select %p41, %s42, %s43
      %p47 = pneg %p41
      %p48 = scmp.eq.s32.totalorder %s18, 1
      %p49 = por %p47, %p48
      %p50 = scmp.ne.s32.totalorder %s42, %s45
      %p51 = scmp.eq.s32.totalorder %s18, 0
      %p52 = por %p50, %p51
      %p53 = scmp.ne.s32.totalorder %s42, %s45
      %p54 = scmp.eq.s32.totalorder %s23, 1
      %p55 = por %p53, %p54
      %p56 = scmp.ne.s32.totalorder %s45, %s46
      %p57 = scmp.eq.s32.totalorder %s23, 0
      %p58 = por %p56, %p57
      %p59 = scmp.ne.s32.totalorder %s45, %s46
      %p60 = scmp.eq.s32.totalorder %s24, 1
      %p61 = por %p59, %p60
      %p63 = scmp.ne.s32.totalorder %s46, %s62
      %p64 = scmp.eq.s32.totalorder %s24, 0
      %p65 = por %p63, %p64
      %s66 = ssub.s32 %s25, %s37
      %s67 = ssub.s32 %s26, %s33
      %s68 = sor.u32 %s66, %s67
      %p69 = scmp.eq.s32.totalorder %s68, 0
      %s71 = sadd.s32 %s70, 1
      %s72 = scalar_select %p69, %s70, %s71
      %p75 = pneg %p69
      %p76 = scmp.eq.s32.totalorder %s18, 1
      %p77 = por %p75, %p76
      %p78 = scmp.ne.s32.totalorder %s70, %s73
      %p79 = scmp.eq.s32.totalorder %s18, 0
      %p80 = por %p78, %p79
      %p81 = scmp.ne.s32.totalorder %s70, %s73
      %p82 = scmp.eq.s32.totalorder %s23, 1
      %p83 = por %p81, %p82
      %p84 = scmp.ne.s32.totalorder %s73, %s74
      %p85 = scmp.eq.s32.totalorder %s23, 0
      %p86 = por %p84, %p85
      %p87 = scmp.ne.s32.totalorder %s73, %s74
      %p88 = scmp.eq.s32.totalorder %s24, 1
      %p89 = por %p87, %p88
      %p91 = scmp.ne.s32.totalorder %s74, %s90
      %p92 = scmp.eq.s32.totalorder %s24, 0
      %p93 = por %p91, %p92
      %s95 = sadd.s32 %s94, 1
      %p98 = scmp.eq.s32.totalorder %s18, 1
      %p99 = scmp.ne.s32.totalorder %s94, %s96
      %p100 = scmp.eq.s32.totalorder %s18, 0
      %p101 = por %p99, %p100
      %p102 = scmp.ne.s32.totalorder %s94, %s96
      %p103 = scmp.eq.s32.totalorder %s23, 1
      %p104 = por %p102, %p103
      %p105 = scmp.ne.s32.totalorder %s96, %s97
      %p106 = scmp.eq.s32.totalorder %s23, 0
      %p107 = por %p105, %p106
      %p108 = scmp.ne.s32.totalorder %s96, %s97
      %p109 = scmp.eq.s32.totalorder %s24, 1
      %p110 = por %p108, %p109
      %p112 = scmp.ne.s32.totalorder %s97, %s111
      %p113 = scmp.eq.s32.totalorder %s24, 0
      %p114 = por %p112, %p113
      %s115 = ssub.s32 %s25, %s37
      %p116 = scmp.eq.s32.totalorder %s115, 0
      %s118 = sadd.s32 %s117, 1
      %s119 = scalar_select %p116, %s117, %s118
      %p122 = pneg %p116
      %p123 = scmp.eq.s32.totalorder %s18, 1
      %p124 = por %p122, %p123
      %p125 = scmp.ne.s32.totalorder %s117, %s120
      %p126 = scmp.eq.s32.totalorder %s18, 0
      %p127 = por %p125, %p126
      %p128 = scmp.ne.s32.totalorder %s117, %s120
      %p129 = scmp.eq.s32.totalorder %s23, 1
      %p130 = por %p128, %p129
      %p131 = scmp.ne.s32.totalorder %s120, %s121
      %p132 = scmp.eq.s32.totalorder %s23, 0
      %p133 = por %p131, %p132
      %p134 = scmp.ne.s32.totalorder %s120, %s121
      %p135 = scmp.eq.s32.totalorder %s24, 1
      %p136 = por %p134, %p135
      %p138 = scmp.ne.s32.totalorder %s121, %s137
      %p139 = scmp.eq.s32.totalorder %s24, 0
      %p140 = por %p138, %p139
      %p141 = scmp.le.s32.totalorder 1, %s18
      %p142 = scmp.lt.s32.totalorder %s18, 3
      %p143 = pnand %p141, %p142
      %p144 = pneg %p143
      // Predicated region
      $region9: #{tpu_custom_call.1} parent=5 // pred_check
        _
      $region10: #{tpu_custom_call.1} parent=5 // pred_check_branch
        %146 = sbr.rel (%p143) target = $region12
      $region11: #{tpu_custom_call.1} parent=5 // pred_region
        %s147 = ssub.s32 %s18, 1
        // Predicated region
        $region13: #{tpu_custom_call.1} parent=11 // pred_check
          %p148 = pneg %p107
        $region14: #{tpu_custom_call.1} parent=11 // pred_check_branch
          %150 = sbr.rel (%p148) target = $region16
        $region15: #{tpu_custom_call.1} parent=11 // pred_region
          %s152 = ssub.s32 64, 64
          %153 = vsyncadd [#allocation7], %s152
          %s154 = sshll.u32 [#allocation8], 4
          %s155 = int_to_ptr.vmem [resolvable:$true] %s154
          %160 = dma.hbm_to_vmem [thread:$0]  %s2, 64, %s155, [#allocation7], 16, 16, 1
        $region16: #{tpu_custom_call.1} parent=11 // pred_fallthru
          _
      $region12: #{tpu_custom_call.1} parent=5 // pred_fallthru
        _
      %p161 = scmp.lt.s32.totalorder %s18, 2
      // Predicated region
      $region17: #{tpu_custom_call.1} parent=5 // pred_check
        %p162 = pneg %p161
      $region18: #{tpu_custom_call.1} parent=5 // pred_check_branch
        %164 = sbr.rel (%p162) target = $region20
      $region19: #{tpu_custom_call.1} parent=5 // pred_region
        // Predicated region
        $region21: #{tpu_custom_call.1} parent=19 // pred_check
          %p165 = pneg %p52
        $region22: #{tpu_custom_call.1} parent=19 // pred_check_branch
          %167 = sbr.rel (%p165) target = $region24
        $region23: #{tpu_custom_call.1} parent=19 // pred_region
          %s168 = sand.u32 %s42, 1
          %s169 = scalar_lea.sflag [#allocation4], %s168
          %s170 = sand.u32 %s42, 1
          %s171 = smul.addr %s170, 8
          %s172 = scalar_lea.vmem [#allocation3], %s171
          %s174 = ssub.s32 128, 128
          %175 = vsyncadd %s169, %s174
          %s176 = smul.addr %s25, 4
          %s177 = sadd.s32 %s26, %s176
          %s178 = smul.addr %s177, 32
          %s179 = scalar_lea.hbm %s0, %s178
          %s180 = sshll.u32 %s172, 4
          %s181 = int_to_ptr.vmem [resolvable:$true] %s180
          %186 = dma.hbm_to_vmem [thread:$0]  %s179, 128, %s181, %s169, 32, 32, 2
        $region24: #{tpu_custom_call.1} parent=19 // pred_fallthru
          _
        // Predicated region
        $region25: #{tpu_custom_call.1} parent=19 // pred_check
          %p187 = pneg %p80
        $region26: #{tpu_custom_call.1} parent=19 // pred_check_branch
          %189 = sbr.rel (%p187) target = $region28
        $region27: #{tpu_custom_call.1} parent=19 // pred_region
          %s190 = sand.u32 %s18, 1
          %s191 = scalar_lea.sflag [#allocation7], %s190
          %s192 = sand.u32 %s70, 1
          %s193 = smul.addr %s192, 8
          %s194 = scalar_lea.vmem [#allocation6], %s193
          %s196 = ssub.s32 128, 128
          %197 = vsyncadd %s191, %s196
          %s198 = smul.addr %s25, 4
          %s199 = sadd.s32 %s26, %s198
          %s200 = smul.addr %s199, 32
          %s201 = scalar_lea.hbm %s1, %s200
          %s202 = sshll.u32 %s194, 4
          %s203 = int_to_ptr.vmem [resolvable:$true] %s202
          %208 = dma.hbm_to_vmem [thread:$0]  %s201, 128, %s203, %s191, 32, 32, 2
        $region28: #{tpu_custom_call.1} parent=19 // pred_fallthru
          _
      $region20: #{tpu_custom_call.1} parent=5 // pred_fallthru
        _
      %p209 = scmp.le.s32.totalorder 1, %s18
      %p210 = scmp.lt.s32.totalorder %s18, 3
      %p211 = pnand %p209, %p210
      %p212 = pneg %p211
      // Predicated region
      $region29: #{tpu_custom_call.1} parent=5 // pred_check
        _
      $region30: #{tpu_custom_call.1} parent=5 // pred_check_branch
        %214 = sbr.rel (%p211) target = $region32
      $region31: #{tpu_custom_call.1} parent=5 // pred_region
        %s215 = ssub.s32 %s18, 1
        %s216 = sand.u32 %s45, 1
        %s217 = scalar_lea.sflag [#allocation4], %s216
        %s218 = sand.u32 %s45, 1
        %s219 = smul.addr %s218, 8
        %s220 = scalar_lea.vmem [#allocation3], %s219
        // Predicated region
        $region33: #{tpu_custom_call.1} parent=31 // pred_check
          %p221 = pneg %p58
        $region34: #{tpu_custom_call.1} parent=31 // pred_check_branch
          %223 = sbr.rel (%p221) target = $region36
        $region35: #{tpu_custom_call.1} parent=31 // pred_region
          %224 = dma.done %s217, 128
        $region36: #{tpu_custom_call.1} parent=31 // pred_fallthru
          _
        %s225 = sand.u32 %s23, 1
        %s226 = scalar_lea.sflag [#allocation7], %s225
        %s227 = sand.u32 %s73, 1
        %s228 = smul.addr %s227, 8
        %s229 = scalar_lea.vmem [#allocation6], %s228
        // Predicated region
        $region37: #{tpu_custom_call.1} parent=31 // pred_check
          %p230 = pneg %p86
        $region38: #{tpu_custom_call.1} parent=31 // pred_check_branch
          %232 = sbr.rel (%p230) target = $region40
        $region39: #{tpu_custom_call.1} parent=31 // pred_region
          %233 = dma.done %s226, 128
        $region40: #{tpu_custom_call.1} parent=31 // pred_fallthru
          _
        // Predicated region
        $region41: #{tpu_custom_call.1} parent=31 // pred_check
          %p234 = pneg %p107
        $region42: #{tpu_custom_call.1} parent=31 // pred_check_branch
          %236 = sbr.rel (%p234) target = $region44
        $region43: #{tpu_custom_call.1} parent=31 // pred_region
          %237 = dma.done [#allocation7], 64
        $region44: #{tpu_custom_call.1} parent=31 // pred_fallthru
          _
        %s238 = sand.u32 %s45, 1
        %s239 = scalar_lea.sflag [#allocation4], %s238
        %s240 = sand.u32 %s45, 1
        %s241 = smul.addr %s240, 8
        %s242 = scalar_lea.vmem [#allocation3], %s241
        %p243 = pneg %p58
        %p244 = pneg %p55
        %s245 = sand.u32 %s23, 1
        %s246 = scalar_lea.sflag [#allocation7], %s245
        %s247 = sand.u32 %s73, 1
        %s248 = smul.addr %s247, 8
        %s249 = scalar_lea.vmem [#allocation6], %s248
        %p250 = pneg %p86
        %p251 = pneg %p83
        %p252 = pneg %p107
        %p253 = pneg %p104
        %p254 = pneg %p133
        %p255 = pneg %p130
        %s256 = sand.u32 %s120, 1
        %s257 = scalar_lea.sflag [#allocation5], %s256
        %s258 = sand.u32 %s120, 1
        %s259 = smul.addr %s258, 8
        %s260 = scalar_lea.vmem [#allocation9], %s259
        %p261 = scmp.eq.s32.totalorder %s28, 0
        // Predicated region
        $region45: #{tpu_custom_call.1} parent=31 // pred_check
          %p262 = pneg %p261
        $region46: #{tpu_custom_call.1} parent=31 // pred_check_branch
          %264 = sbr.rel (%p262) target = $region48
        $region47: #{tpu_custom_call.1} parent=31 // pred_region
          %265 = vst [vmem:[#allocation2] sm:$0x3] 0.0
        $region48: #{tpu_custom_call.1} parent=31 // pred_fallthru
          _
        %v266 = vld [vmem:[%s220] sm:$0x3]
        %v267 = vld [vmem:[%s220 + $0x2] sm:$0x3]
        %v268 = vld [vmem:[%s220 + $0x4] sm:$0x3]
        %v269 = vld [vmem:[%s220 + $0x6] sm:$0x3]
        %v270 = vld [vmem:[%s229] sm:$0x3]
        %v271 = vld [vmem:[%s229 + $0x2] sm:$0x3]
        %v272 = vld [vmem:[%s229 + $0x4] sm:$0x3]
        %v273 = vld [vmem:[%s229 + $0x6] sm:$0x3]
        %v274 = vld [vmem:[#allocation8] sm:$0x1]
        %v275 = vld [vmem:[#allocation8 + $0x1] sm:$0x1]
        %v276 = vld [vmem:[#allocation8 + $0x2] sm:$0x1]
        %v277 = vld [vmem:[#allocation8 + $0x3] sm:$0x1]
        %vm278 = vcmask 1041408
        %v279 = vsel %vm278, %v266, -inf
        %v280 = vsel %vm278, %v267, -inf
        %v281 = vsel %vm278, %v268, -inf
        %v282 = vsel %vm278, %v269, -inf
        %v283 = vmax.f32 %v279, %v280
        %v284 = vmax.f32 %v281, %v282
        %v285 = vmax.f32 %v283, %v284
        %v286 = vsub.f32 %v266, %v285
        %v287 = vsub.f32 %v267, %v285
        %v288 = vsub.f32 %v268, %v285
        %v289 = vsub.f32 %v269, %v285
        %v290 = vmul.f32 %v286, 1.442695
        %v291 = vpow.pop %v290
        %v292 = vmul.f32 %v287, 1.442695
        %v293 = vpow.pop %v292
        %v294 = vmul.f32 %v288, 1.442695
        %v295 = vpow.pop %v294
        %v296 = vmul.f32 %v289, 1.442695
        %v297 = vpow.pop %v296
        %v298 = vsel %vm278, %v291, 0.0
        %v299 = vsel %vm278, %v293, 0.0
        %v300 = vadd.f32 %v298, %v299
        %v301 = vsel %vm278, %v295, 0.0
        %v302 = vadd.f32 %v300, %v301
        %v303 = vsel %vm278, %v297, 0.0
        %v304 = vadd.f32 %v302, %v303
        %v305 = vlog2.pop %v304
        %v306 = vmul.f32 %v305, 0.6931472
        %v307 = vsub.f32 %v286, %v306
        %v308 = vsub.f32 %v287, %v306
        %v309 = vsub.f32 %v288, %v306
        %v310 = vsub.f32 %v289, %v306
        %v311 = vmax.f32 %v307, -16.118095
        %v312 = vmax.f32 %v308, -16.118095
        %v313 = vmax.f32 %v309, -16.118095
        %v314 = vmax.f32 %v310, -16.118095
        %v315 = vmul.f32 %v270, %v311
        %v316 = vmul.f32 %v271, %v312
        %v317 = vmul.f32 %v272, %v313
        %v318 = vmul.f32 %v273, %v314
        %v323 = vlaneseq
        %v324 = vshrl.u32 %v323, 7
        %v325 = vsub.s32 0, %v324
        %v326 = vrot.slane %v274, %v325
        %v327 = vlaneseq
        %v328 = vshrl.u32 %v327, 7
        %v329 = vsub.s32 0, %v328
        %v330 = vrot.slane %v275, %v329
        %v331 = vlaneseq
        %v332 = vshrl.u32 %v331, 7
        %v333 = vsub.s32 0, %v332
        %v334 = vrot.slane %v276, %v333
        %v335 = vlaneseq
        %v336 = vshrl.u32 %v335, 7
        %v337 = vsub.s32 0, %v336
        %v338 = vrot.slane %v277, %v337
        %v343 = vmul.f32 %v326, %v315
        %v344 = vmul.f32 %v330, %v316
        %v345 = vmul.f32 %v334, %v317
        %v346 = vmul.f32 %v338, %v318
        %v347 = vld [vmem:[#allocation2] sm:$0x3]
        %v348 = vsel %vm278, %v343, 0.0
        %v349 = vsel %vm278, %v344, 0.0
        %v350 = vadd.f32 %v348, %v349
        %v351 = vsel %vm278, %v345, 0.0
        %v352 = vadd.f32 %v350, %v351
        %v353 = vsel %vm278, %v346, 0.0
        %v354 = vadd.f32 %v352, %v353
        %v355 = vadd.f32 %v347, %v354
        %356 = vst [vmem:[#allocation2] sm:$0x3] %v355
        // Predicated region
        $region49: #{tpu_custom_call.1} parent=31 // pred_check
          %p357 = pneg %p261
        $region50: #{tpu_custom_call.1} parent=31 // pred_check_branch
          %359 = sbr.rel (%p357) target = $region52
        $region51: #{tpu_custom_call.1} parent=31 // pred_region
          %v360 = vld [vmem:[#allocation2] sm:$0x3]
          %v361 = vsel %vm278, %v360, 0.0
          %362 = vadd.xlane.f32.xlu0 %v361
          %v363 = vpop.xlane.xlu0 %362
          %v364 = vrot.slane %v363, 4
          %v365 = vadd.f32 %v363, %v364
          %v366 = vrot.slane %v365, 2
          %v367 = vadd.f32 %v365, %v366
          %v368 = vrot.slane %v367, 1
          %v369 = vadd.f32 %v367, %v368
          %s370 = vtos %v369
          %s371 = smul.f32 %s370, -0.00048828125
          %v372 = vstv %s371
          %373 = vst [vmem:[%s260] sm:$0xff] %v372
        $region52: #{tpu_custom_call.1} parent=31 // pred_fallthru
          _
        %s374 = sand.u32 %s120, 1
        %s375 = scalar_lea.sflag [#allocation5], %s374
        %s376 = sand.u32 %s120, 1
        %s377 = smul.addr %s376, 8
        %s378 = scalar_lea.vmem [#allocation9], %s377
        // Predicated region
        $region53: #{tpu_custom_call.1} parent=31 // pred_check
          %p379 = pneg %p130
        $region54: #{tpu_custom_call.1} parent=31 // pred_check_branch
          %381 = sbr.rel (%p379) target = $region56
        $region55: #{tpu_custom_call.1} parent=31 // pred_region
          %s383 = ssub.s32 128, 128
          %384 = vsyncadd %s375, %s383
          %s385 = smul.addr %s27, 128
          %s386 = scalar_lea.hbm %s3, %s385
          %s388 = sshll.u32 %s378, 4
          %s389 = int_to_ptr.vmem [resolvable:$true] %s388
          %391 = dma.vmem_to_hbm [thread:$0]  %s389, 128, %s386, %s375
        $region56: #{tpu_custom_call.1} parent=31 // pred_fallthru
          _
      $region32: #{tpu_custom_call.1} parent=5 // pred_fallthru
        _
      %p392 = scmp.le.s32.totalorder 2, %s18
      // Predicated region
      $region57: #{tpu_custom_call.1} parent=5 // pred_check
        %p393 = pneg %p392
      $region58: #{tpu_custom_call.1} parent=5 // pred_check_branch
        %395 = sbr.rel (%p393) target = $region60
      $region59: #{tpu_custom_call.1} parent=5 // pred_region
        %s396 = ssub.s32 %s18, 2
        // Predicated region
        $region61: #{tpu_custom_call.1} parent=59 // pred_check
          %p397 = pneg %p136
        $region62: #{tpu_custom_call.1} parent=59 // pred_check_branch
          %399 = sbr.rel (%p397) target = $region64
        $region63: #{tpu_custom_call.1} parent=59 // pred_region
          %s400 = sand.u32 %s121, 1
          %s401 = scalar_lea.sflag [#allocation5], %s400
          %s402 = sand.u32 %s121, 1
          %s403 = smul.addr %s402, 8
          %s404 = scalar_lea.vmem [#allocation9], %s403
          %405 = dma.done %s401, 128
        $region64: #{tpu_custom_call.1} parent=59 // pred_fallthru
          _
      $region60: #{tpu_custom_call.1} parent=5 // pred_fallthru
        _
    $region6: #{tpu_custom_call.1} parent=1 // loop_footer
      %s22 = sadd.s32 1, %s18
    $region7: #{tpu_custom_call.1} parent=1 // loop_footer_branch
      %17 = sbr.rel target = $region3
    $region8: #{tpu_custom_call.1} parent=1 // loop_exit
      _
    %406 = vsyncpa [#allocation4], 1
    %s407 = scalar_lea.sflag [#allocation4], 1
    %408 = vsyncpa %s407, 1
    %409 = vsyncpa [#allocation7], 1
    %s410 = scalar_lea.sflag [#allocation7], 1
    %411 = vsyncpa %s410, 1
    %412 = vsyncpa [#allocation5], 1
    %s413 = scalar_lea.sflag [#allocation5], 1
    %414 = vsyncpa %s413, 1

</llo_original>
